<compile_context>
chip_gen: v6e
topology: v6e:2x2x1
jax: 0.10.0
libtpu: 0.0.40
codegen_flags: <defaults>
</compile_context>

<pallas_src>
import math
import functools

import jax
import jax.numpy as jnp
from jax.experimental import pallas as pl
from jax.experimental.pallas import tpu as pltpu


def _pos_enc_kernel(seed_ref, x_ref, pe_ref, o_ref, *, rate: float):
    # x_ref / pe_ref / o_ref: (ts, B*D) lane-dense tiles.
    y = x_ref[...] + pe_ref[...]

    if rate > 0.0:
        ts, ncols = x_ref.shape
        scale = 1.0 / (1.0 - rate)
        # keep iff hash_bits >= rate * 2^32  ->  P(keep) = 1 - rate
        thresh = jnp.uint32(min(int(round(rate * float(1 << 32))), (1 << 32) - 1))

        # Absolute flat element index -> dropout mask independent of tiling.
        row0 = pl.program_id(0) * ts
        rows = jax.lax.broadcasted_iota(jnp.int32, (ts, ncols), 0) + row0
        cols = jax.lax.broadcasted_iota(jnp.int32, (ts, ncols), 1)
        idx = (rows * ncols + cols).astype(jnp.uint32)

        # splitmix32-style mix of (index, seed): cheap uint32 VPU ops only.
        h = idx ^ (seed_ref[0].astype(jnp.uint32) * jnp.uint32(0x9E3779B9))
        h = (h ^ (h >> 16)) * jnp.uint32(0x7FEB352D)
        h = (h ^ (h >> 15)) * jnp.uint32(0x846CA68B)
        h = h ^ (h >> 16)

        keep = h >= thresh
        y = jnp.where(keep, y * jnp.asarray(scale, y.dtype), jnp.zeros_like(y))

    o_ref[...] = y.astype(o_ref.dtype)


def make_sinusoidal_pe(d_model: int, max_len: int = 1536) -> jnp.ndarray:
    """Deterministic buffer setup (mirrors nn.Module.__init__)."""
    position = jnp.arange(max_len, dtype=jnp.float32)[:, None]            # (max_len, 1)
    div_term = jnp.exp(
        jnp.arange(0, d_model, 2, dtype=jnp.float32) * (-math.log(10000.0) / d_model)
    )                                                                      # (d_model//2,)
    pe = jnp.zeros((max_len, 1, d_model), dtype=jnp.float32)
    pe = pe.at[:, 0, 0::2].set(jnp.sin(position * div_term))
    pe = pe.at[:, 0, 1::2].set(jnp.cos(position * div_term))
    return pe


def _choose_seq_tile(S: int, row_bytes: int, target_bytes: int = 4 * 1024 * 1024) -> int:
    """Largest seq tile that (a) divides S, (b) is a multiple of 8, and
    (c) keeps one tile at a few MiB so pipelining overlaps DMA/compute."""
    if S * row_bytes <= target_bytes:
        return S
    divisors = [d for d in range(8, S, 8) if S % d == 0]
    under = [d for d in divisors if d * row_bytes <= target_bytes]
    if under:
        return max(under)
    if divisors:
        return min(divisors)
    return S  # S not a multiple of 8: fall back to one full-extent block


def positional_encoding(x, pe, *, rate: float = 0.0, seed: int = 0,
                        seq_tile=None, vmem_limit_bytes: int = 48 * 1024 * 1024):
    """Forward pass: dropout(x + pe[:seq_len]).  x: [S, B, D], pe: [max_len, 1, D]."""
    assert 0.0 <= rate < 1.0, "dropout rate must be in [0, 1)"
    S, B, D = x.shape
    BD = B * D

    # Lane-dense presentation: [S, B*D] for x/out; pe broadcast over batch once,
    # cast to x.dtype in the wrapper (halves pe DMA bytes for bf16 activations).
    x2 = x.reshape(S, BD)
    pe2 = jnp.broadcast_to(pe[:S].astype(x.dtype), (S, B, D)).reshape(S, BD)

    row_bytes = BD * x.dtype.itemsize
    ts = seq_tile if seq_tile is not None else _choose_seq_tile(S, row_bytes)
    assert S % ts == 0

    seed_arr = jnp.array([seed], dtype=jnp.int32)
    kernel = functools.partial(_pos_enc_kernel, rate=float(rate))

    out2 = pl.pallas_call(
        kernel,
        out_shape=jax.ShapeDtypeStruct((S, BD), x.dtype),
        grid_spec=pltpu.PrefetchScalarGridSpec(
            num_scalar_prefetch=1,                          # seed lands in SMEM
            grid=(S // ts,),
            in_specs=[
                pl.BlockSpec((ts, BD), lambda i, seed: (i, 0)),   # x tile
                pl.BlockSpec((ts, BD), lambda i, seed: (i, 0)),   # pe tile
            ],
            out_specs=pl.BlockSpec((ts, BD), lambda i, seed: (i, 0)),
        ),
        compiler_params=pltpu.CompilerParams(
            dimension_semantics=("parallel",),              # no carried state; v7x 2-TC sharding
            vmem_limit_bytes=vmem_limit_bytes,
        ),
    )(seed_arr, x2, pe2)

    return out2.reshape(S, B, D)


if __name__ == "__main__":
    # Small shapes consistent with the module: x is [seq_len, batch, d_model].
    seq_len, batch, d_model, max_len = 8, 2, 32, 1536

    key = jax.random.PRNGKey(0)
    x = jax.random.normal(key, (seq_len, batch, d_model), dtype=jnp.float32)
    pe = make_sinusoidal_pe(d_model, max_len)

    # Eval-mode forward (dropout == identity): check against pure-JAX reference.
    out_eval = jax.block_until_ready(positional_encoding(x, pe, rate=0.0))
    ref = x + pe[:seq_len]
    assert out_eval.shape == (seq_len, batch, d_model)
    assert jnp.allclose(out_eval, ref, atol=1e-6, rtol=1e-6)

    # Training-mode forward (p=0.1): every output element is either exactly 0
    # (dropped) or (x + pe) / (1 - p) (kept).
    rate = 0.1
    out_train = jax.block_until_ready(positional_encoding(x, pe, rate=rate, seed=1234))
    assert out_train.shape == (seq_len, batch, d_model)
    ref_scaled = ref / (1.0 - rate)
    dropped = out_train == 0.0
    kept_ok = jnp.isclose(out_train, ref_scaled, atol=1e-5, rtol=1e-5)
    assert bool(jnp.all(jnp.logical_or(dropped, kept_ok)))

    print("KERNEL_OK")
</pallas_src>

<mosaic_0001>
module attributes {stable_mosaic.version = 11 : i64} {
  func.func @_pos_enc_kernel(%arg0: i32, %arg1: memref<1xi32, #tpu.memory_space<smem>>, %arg2: memref<8x64xf32, #tpu.memory_space<vmem>>, %arg3: memref<8x64xf32, #tpu.memory_space<vmem>>, %arg4: memref<8x64xf32, #tpu.memory_space<vmem>>) attributes {dimension_semantics = [#tpu.dimension_semantics<parallel>], iteration_bounds = array<i64: 1>, scalar_prefetch = 1 : i64, scratch_operands = 0 : i64, tpu.core_type = #tpu.core_type<tc>, window_params = [{transform_indices = @transform_0, window_bounds = array<i64: 8, 64>}, {transform_indices = @transform_1, window_bounds = array<i64: 8, 64>}, {transform_indices = @transform_2, window_bounds = array<i64: 8, 64>}]} {
    %c0 = arith.constant 0 : index
    %c0_0 = arith.constant 0 : index
    %0 = vector.load %arg2[%c0, %c0_0] : memref<8x64xf32, #tpu.memory_space<vmem>>, vector<8x64xf32>
    %c0_1 = arith.constant 0 : index
    %c0_2 = arith.constant 0 : index
    %1 = vector.load %arg3[%c0_1, %c0_2] : memref<8x64xf32, #tpu.memory_space<vmem>>, vector<8x64xf32>
    %2 = arith.addf %0, %1 : vector<8x64xf32>
    %c0_3 = arith.constant 0 : index
    %c0_4 = arith.constant 0 : index
    %3 = vector.load %arg4[%c0_3, %c0_4] : memref<8x64xf32, #tpu.memory_space<vmem>>, vector<8x64xf32>
    tpu.vector_store %arg4[%c0_3, %c0_4], %2 {strides = array<i32>} : memref<8x64xf32, #tpu.memory_space<vmem>>, vector<8x64xf32>,
    return
  }
  func.func @transform_0(%arg0: i32, %arg1: memref<1xi32, #tpu.memory_space<smem>>) -> (i32, i32) {
    %c0_i32 = arith.constant 0 : i32
    %c0_i32_0 = arith.constant 0 : i32
    return %arg0, %c0_i32 : i32, i32
  }
  func.func @transform_1(%arg0: i32, %arg1: memref<1xi32, #tpu.memory_space<smem>>) -> (i32, i32) {
    %c0_i32 = arith.constant 0 : i32
    %c0_i32_0 = arith.constant 0 : i32
    return %arg0, %c0_i32 : i32, i32
  }
  func.func @transform_2(%arg0: i32, %arg1: memref<1xi32, #tpu.memory_space<smem>>) -> (i32, i32) {
    %c0_i32 = arith.constant 0 : i32
    %c0_i32_0 = arith.constant 0 : i32
    return %arg0, %c0_i32 : i32, i32
  }
}

</mosaic_0001>

<llo_original>
// kernel: tpu_custom_call.1
$region0: #{tpu_custom_call.1}
  #allocation0 [shape = 'u32[]', space=smem, size = 0x4, offset = 0x4, fixed_abs, tag = 'smem constant byte address 0x4 - core index']
  #allocation1 [shape = 'u32[144,128]{1,0:T(1,128)}', space=vmem, size = 0x12000, scoped, tag = 'internal scratch']
  #allocation2 [shape = 's32[1]{0}', space=sflag, size = 0x4, scoped, tag = 'scoped memory for tpu_custom_call.1']
  #allocation3 [shape = 's32[1]{0:T(128)S(6)}', space=smem, size = 0x200, scoped, tag = 'prefetched SMEM operand 0']
  %s0 = inlined_call_operand.<no memory space> [shape: s32[1], index: 0, kind: input, shape index: {}]
  %s1 = inlined_call_operand.hbm [shape: f32[8,64], index: 1, kind: input, shape index: {}]
  %s2 = inlined_call_operand.hbm [shape: f32[8,64], index: 2, kind: input, shape index: {}]
  %s3 = inlined_call_operand.hbm [shape: f32[8,64], index: 3, kind: output, shape index: {}]
  %s4 = sld [smem:[#allocation0]]
  $region26: #{tpu_custom_call.1} parent=0
    _
  %s6 = ssub.s32 1, %s4
  %s7 = scalar_select 0, %s6, %s4
  %8 = sst [smem:[#allocation3]] %s0
  $region1: #{tpu_custom_call.1} parent=0
    #allocation4 [shape = 'u8[4096]{0}', space=vmem, size = 0x1000, scoped, tag = 'input window, operand 1, single buffered']
    #allocation5 [shape = 's32[1]{0}', space=sflag, size = 0x4, scoped, tag = 'scoped memory for tpu_custom_call.1']
    #allocation6 [shape = 's32[1]{0}', space=sflag, size = 0x4, scoped, tag = 'scoped memory for tpu_custom_call.1']
    #allocation7 [shape = 'u8[4096]{0}', space=vmem, size = 0x1000, scoped, tag = 'input window, operand 2, single buffered']
    #allocation8 [shape = 's32[1]{0}', space=sflag, size = 0x4, scoped, tag = 'scoped memory for tpu_custom_call.1']
    #allocation9 [shape = 'u8[4096]{0}', space=vmem, size = 0x1000, scoped, tag = 'output window, operand 0, single buffered']
    %9 = vsyncpa [#allocation5], 0
    %10 = vsyncpa [#allocation8], 0
    %11 = vsyncpa [#allocation6], 0
    // Predicated region
    $region2: #{tpu_custom_call.1} parent=1 // pred_check
      _
    $region3: #{tpu_custom_call.1} parent=1 // pred_check_branch
      %13 = sbr.rel (0) target = $region5
    $region4: #{tpu_custom_call.1} parent=1 // pred_region
      %s15 = ssub.s32 128, 128
      %16 = vsyncadd [#allocation5], %s15
      %s18 = sshll.u32 [#allocation4], 4
      %s19 = int_to_ptr.vmem [resolvable:$true] %s18
      %21 = dma.hbm_to_vmem [thread:$0]  %s1, 128, %s19, [#allocation5]
    $region5: #{tpu_custom_call.1} parent=1 // pred_fallthru
      _
    // Predicated region
    $region6: #{tpu_custom_call.1} parent=1 // pred_check
      _
    $region7: #{tpu_custom_call.1} parent=1 // pred_check_branch
      %23 = sbr.rel (0) target = $region9
    $region8: #{tpu_custom_call.1} parent=1 // pred_region
      %s25 = ssub.s32 128, 128
      %26 = vsyncadd [#allocation8], %s25
      %s28 = sshll.u32 [#allocation7], 4
      %s29 = int_to_ptr.vmem [resolvable:$true] %s28
      %31 = dma.hbm_to_vmem [thread:$0]  %s2, 128, %s29, [#allocation8]
    $region9: #{tpu_custom_call.1} parent=1 // pred_fallthru
      _
    // Predicated region
    $region10: #{tpu_custom_call.1} parent=1 // pred_check
      _
    $region11: #{tpu_custom_call.1} parent=1 // pred_check_branch
      %33 = sbr.rel (0) target = $region13
    $region12: #{tpu_custom_call.1} parent=1 // pred_region
      %34 = dma.done [#allocation5], 128
    $region13: #{tpu_custom_call.1} parent=1 // pred_fallthru
      _
    // Predicated region
    $region14: #{tpu_custom_call.1} parent=1 // pred_check
      _
    $region15: #{tpu_custom_call.1} parent=1 // pred_check_branch
      %36 = sbr.rel (0) target = $region17
    $region16: #{tpu_custom_call.1} parent=1 // pred_region
      %37 = dma.done [#allocation8], 128
    $region17: #{tpu_custom_call.1} parent=1 // pred_fallthru
      _
    %v38 = vld [vmem:[#allocation4] sm:$0xff]
    %v39 = vld [vmem:[#allocation7] sm:$0xff]
    %v40 = vadd.f32 %v38, %v39
    %vm41 = vcmask 523264
    %42 = vst.msk [vmem:[#allocation9] sm:$0xff] %vm41, %v40
    // Predicated region
    $region18: #{tpu_custom_call.1} parent=1 // pred_check
      _
    $region19: #{tpu_custom_call.1} parent=1 // pred_check_branch
      %44 = sbr.rel (0) target = $region21
    $region20: #{tpu_custom_call.1} parent=1 // pred_region
      %s46 = ssub.s32 128, 128
      %47 = vsyncadd [#allocation6], %s46
      %s49 = sshll.u32 [#allocation9], 4
      %s50 = int_to_ptr.vmem [resolvable:$true] %s49
      %52 = dma.vmem_to_hbm [thread:$0]  %s50, 128, %s3, [#allocation6]
    $region21: #{tpu_custom_call.1} parent=1 // pred_fallthru
      _
    // Predicated region
    $region22: #{tpu_custom_call.1} parent=1 // pred_check
      _
    $region23: #{tpu_custom_call.1} parent=1 // pred_check_branch
      %54 = sbr.rel (0) target = $region25
    $region24: #{tpu_custom_call.1} parent=1 // pred_region
      %55 = dma.done [#allocation6], 128
    $region25: #{tpu_custom_call.1} parent=1 // pred_fallthru
      _
    %56 = vsyncpa [#allocation5], 1
    %57 = vsyncpa [#allocation8], 1
    %58 = vsyncpa [#allocation6], 1

</llo_original>
